<compile_context>
chip_gen: v5e
topology: v5e:2x2
jax: 0.10.0
libtpu: 0.0.40
codegen_flags: <defaults>
</compile_context>

<pallas_src>
import functools

import jax
import jax.numpy as jnp
from jax.experimental import pallas as pl
from jax.experimental.pallas import tpu as pltpu

LANE = 128
SUBLANE_F32 = 8


def _round_up(x, m):
    return ((x + m - 1) // m) * m


# ----------------------------------------------------------------------------
# Fused kernel: the whole FeedForward stack for one batch tile.
#   refs layout: (x_ref, w_0..w_{L-1}, b_0..b_{L-1}, o_ref)
# ----------------------------------------------------------------------------
def _make_fused_ffn_kernel(num_layers, compute_dtype):
    def kernel(x_ref, *refs):
        w_refs = refs[:num_layers]
        b_refs = refs[num_layers:2 * num_layers]
        o_ref = refs[2 * num_layers]

        # In-kernel cast: f32 HBM tile -> MXU-dtype operand on the VPU,
        # hidden under the first matmul (no extra HBM pass in the wrapper).
        h = x_ref[...].astype(compute_dtype)
        for l in range(num_layers):
            y = jnp.dot(h, w_refs[l][...], preferred_element_type=jnp.float32)
            y = y + b_refs[l][...]                      # bias-add in f32
            # TODO(synk): training-mode dropout (p=0.1) before the activation
            # on non-final layers is not implemented; eval-mode is identity.
            if l < num_layers - 1:
                # tanh in compute dtype: bf16 EUP path on v6e/v7x, and result
                # is already the narrow operand for the next matmul.
                # (For compute_dtype=float32 this is exactly f32 tanh.)
                h = jnp.tanh(y.astype(compute_dtype))
            else:
                h = jnp.tanh(y)                         # final tanh in f32
        o_ref[...] = h.astype(o_ref.dtype)

    return kernel


# ----------------------------------------------------------------------------
# One-time parameter preparation (outside the hot path).
# ----------------------------------------------------------------------------
def prepare_feedforward_params(params, compute_dtype=jnp.bfloat16):
    """Pad every feature dim to a multiple of 128 lanes and cast once.

    Zero padding is numerically inert: padded weight rows/cols and bias
    entries contribute 0 to the dot, and tanh(0)=0 feeds zero rows next layer.
    """
    weights, biases = [], []
    for w, b in params:
        k, n = w.shape
        k_pad, n_pad = _round_up(k, LANE), _round_up(n, LANE)
        w = jnp.pad(w, ((0, k_pad - k), (0, n_pad - n)))
        b = jnp.pad(b, ((0, n_pad - n),))
        weights.append(w.astype(compute_dtype))             # MXU operand dtype
        biases.append(b.reshape(1, -1).astype(jnp.float32))  # bias-add in f32
    return tuple(weights), tuple(biases)


# ----------------------------------------------------------------------------
# Tiling / VMEM budgeting helpers (all trace-time Python ints).
# ----------------------------------------------------------------------------
def _vmem_budget_bytes():
    """Conservative per-core VMEM budget: v7x has 64 MiB/TC, v5e/v6e 128 MiB."""
    kind = ""
    try:
        kind = jax.devices()[0].device_kind.lower()
    except Exception:
        pass
    if "v7" in kind or "7x" in kind:
        return 48 << 20
    return 100 << 20


def _pick_batch_tile(B, max_dim):
    """Pick tb: minimise padding waste, prefer grid >= 2 (v7x megacore),
    cap when hidden dims are large (v5e f32 live-tile / spill pressure)."""
    cap = 256 if max_dim <= 512 else 128
    B_s = _round_up(B, SUBLANE_F32)
    if B_s <= min(128, cap):
        return B_s                      # whole (sublane-rounded) batch, one tile
    best = None
    for tb in (64, 128, 256):
        if tb > cap:
            continue
        b_pad = _round_up(B, tb)
        waste = b_pad - B
        grid = b_pad // tb
        key = (waste, 0 if grid >= 2 else 1, -tb)
        if best is None or key < best[0]:
            best = (key, tb)
    return best[1]


def _vmem_need_bytes(tb, d_in_pad, out_pad, max_dim, weights, biases, out_itemsize):
    w_bytes = sum(int(w.size) * w.dtype.itemsize for w in weights)   # Buffered(1)
    b_bytes = sum(int(b.size) * b.dtype.itemsize for b in biases)
    x_tile = 2 * tb * d_in_pad * 4            # double-buffered f32 input tile
    o_tile = 2 * tb * out_pad * out_itemsize  # double-buffered output tile
    act = 2 * tb * max_dim * 4                # live f32 activation headroom
    return w_bytes + b_bytes + x_tile + o_tile + act


# ----------------------------------------------------------------------------
# Fused forward: one pallas_call, weights resident in VMEM across all tiles.
# ----------------------------------------------------------------------------
@functools.partial(
    jax.jit,
    static_argnames=("out_dim", "compute_dtype", "out_dtype", "single_buffer_weights"),
)
def feedforward_apply(weights, biases, x, *, out_dim, compute_dtype=jnp.bfloat16,
                      out_dtype=None, single_buffer_weights=True):
    """FeedForward.forward (eval mode) on params from prepare_feedforward_params."""
    B, d_in = x.shape
    num_layers = len(weights)
    d_in_pad = weights[0].shape[0]
    out_pad = weights[-1].shape[1]
    max_dim = max(w.shape[1] for w in weights)
    if out_dtype is None:
        out_dtype = x.dtype
    out_itemsize = jnp.dtype(out_dtype).itemsize

    # Batch tile + VMEM budget check (shrink tb if needed; weights stay resident).
    tb = _pick_batch_tile(B, max_dim)
    budget = _vmem_budget_bytes()
    while (_vmem_need_bytes(tb, d_in_pad, out_pad, max_dim, weights, biases,
                            out_itemsize) > budget and tb > SUBLANE_F32):
        tb = max(SUBLANE_F32, tb // 2)
    need = _vmem_need_bytes(tb, d_in_pad, out_pad, max_dim, weights, biases,
                            out_itemsize)
    if need > budget:
        # TODO(synk): layer-tiled / K-tiled fallback for weight stacks that do
        # not fit VMEM even single-buffered; not needed at these sizes.
        raise ValueError(f"FeedForward weights need {need} B VMEM > budget {budget} B")

    B_pad = _round_up(B, tb)
    if B_pad != B or d_in_pad != d_in:
        # Zero-pad ragged batch rows and the lane dim (pads are sliced off /
        # multiply zero weight rows). Only fires for awkward shapes.
        x = jnp.pad(x, ((0, B_pad - B), (0, d_in_pad - d_in)))

    def _const_spec(shape):
        # Block index never changes -> one resident copy is enough.
        if single_buffer_weights:
            return pl.BlockSpec(shape, lambda i: (0, 0), pipeline_mode=pl.Buffered(1))
        return pl.BlockSpec(shape, lambda i: (0, 0))

    in_specs = [pl.BlockSpec((tb, d_in_pad), lambda i: (i, 0))]
    in_specs += [_const_spec(w.shape) for w in weights]
    in_specs += [_const_spec(b.shape) for b in biases]

    flops = 2 * B_pad * sum(w.shape[0] * w.shape[1] for w in weights)
    transcendentals = B_pad * sum(w.shape[1] for w in weights)
    bytes_accessed = (B_pad * d_in_pad * 4
                      + sum(int(w.size) * w.dtype.itemsize for w in weights)
                      + sum(int(b.size) * b.dtype.itemsize for b in biases)
                      + B_pad * out_pad * out_itemsize)

    out = pl.pallas_call(
        _make_fused_ffn_kernel(num_layers, compute_dtype),
        out_shape=jax.ShapeDtypeStruct((B_pad, out_pad), out_dtype),
        grid=(B_pad // tb,),
        in_specs=in_specs,
        out_specs=pl.BlockSpec((tb, out_pad), lambda i: (i, 0)),
        compiler_params=pltpu.CompilerParams(
            dimension_semantics=("parallel",),
            vmem_limit_bytes=int(min(budget, max(32 << 20, need + (4 << 20)))),
        ),
        cost_estimate=pl.CostEstimate(flops=flops,
                                      transcendentals=transcendentals,
                                      bytes_accessed=bytes_accessed),
    )(x, *weights, *biases)

    return out[:B, :out_dim]


# ----------------------------------------------------------------------------
# Parameter init (mimics nn.Linear's default U(-1/sqrt(fan_in), +)) + reference.
# ----------------------------------------------------------------------------
def init_feedforward_params(key, input_dim, out_dim, hidden_sizes=(128,)):
    n_inputs = [input_dim] + list(hidden_sizes)
    n_outputs = list(hidden_sizes) + [out_dim]
    params = []
    for n_in, n_out in zip(n_inputs, n_outputs):
        key, kw, kb = jax.random.split(key, 3)
        bound = 1.0 / jnp.sqrt(jnp.float32(n_in))
        # Stored as (in, out) == transpose of PyTorch's (out, in) weight.
        w = jax.random.uniform(kw, (n_in, n_out), jnp.float32, -bound, bound)
        b = jax.random.uniform(kb, (n_out,), jnp.float32, -bound, bound)
        params.append((w, b))
    return params


def feedforward_reference(params, x):
    """Pure-JAX reference (f32, eval mode) for correctness checking."""
    for w, b in params:
        x = jnp.tanh(x @ w + b[None, :])
    return x


def _run(params, x, compute_dtype, single_buffer_weights):
    weights, biases = prepare_feedforward_params(params, compute_dtype=compute_dtype)
    out_dim = params[-1][1].shape[0]
    return feedforward_apply(weights, biases, x, out_dim=out_dim,
                             compute_dtype=compute_dtype,
                             single_buffer_weights=single_buffer_weights)


if __name__ == "__main__":
    key = jax.random.PRNGKey(0)
    k_params, k_x = jax.random.split(key)

    batch, input_dim, out_dim = 16, 32, 64
    hidden_sizes = (128,)

    params = init_feedforward_params(k_params, input_dim, out_dim, hidden_sizes)
    x = jax.random.normal(k_x, (batch, input_dim), jnp.float32)

    ref = feedforward_reference(params, x)

    # Exact path: f32 operands everywhere -> tight tolerance vs. reference.
    single_buf = True
    try:
        out_f32 = jax.block_until_ready(_run(params, x, jnp.float32, single_buf))
    except Exception:
        # Fallback for jax versions without single-buffer pipeline_mode support:
        # default double buffering (correctness unaffected, just more VMEM).
        single_buf = False
        out_f32 = jax.block_until_ready(_run(params, x, jnp.float32, single_buf))
    assert out_f32.shape == (batch, out_dim), out_f32.shape
    assert jnp.allclose(out_f32, ref, atol=1e-4, rtol=1e-4), "f32 mismatch"

    # Fast path: bf16 MXU operands + bf16 inter-layer tanh, f32 accumulation.
    out_bf16 = jax.block_until_ready(_run(params, x, jnp.bfloat16, single_buf))
    assert out_bf16.shape == (batch, out_dim), out_bf16.shape
    assert jnp.allclose(out_bf16, ref, atol=3e-2, rtol=3e-2), "bf16 mismatch"

    print("KERNEL_OK")
</pallas_src>

<mosaic_0001>
module attributes {stable_mosaic.version = 11 : i64} {
  func.func @kernel(%arg0: i32, %arg1: memref<16x128xf32, #tpu.memory_space<vmem>>, %arg2: memref<128x128xf32, #tpu.memory_space<vmem>>, %arg3: memref<128x128xf32, #tpu.memory_space<vmem>>, %arg4: memref<1x128xf32, #tpu.memory_space<vmem>>, %arg5: memref<1x128xf32, #tpu.memory_space<vmem>>, %arg6: memref<16x128xf32, #tpu.memory_space<vmem>>) attributes {dimension_semantics = [#tpu.dimension_semantics<parallel>], iteration_bounds = array<i64: 1>, scalar_prefetch = 0 : i64, scratch_operands = 0 : i64, tpu.core_type = #tpu.core_type<tc>, window_params = [{transform_indices = @transform_0, window_bounds = array<i64: 16, 128>}, {pipeline_mode = #tpu.pipeline_mode<synchronous>, transform_indices = @transform_1, window_bounds = array<i64: 128, 128>}, {pipeline_mode = #tpu.pipeline_mode<synchronous>, transform_indices = @transform_2, window_bounds = array<i64: 128, 128>}, {pipeline_mode = #tpu.pipeline_mode<synchronous>, transform_indices = @transform_3, window_bounds = array<i64: 1, 128>}, {pipeline_mode = #tpu.pipeline_mode<synchronous>, transform_indices = @transform_4, window_bounds = array<i64: 1, 128>}, {transform_indices = @transform_5, window_bounds = array<i64: 16, 128>}]} {
    %c0 = arith.constant 0 : index
    %c0_0 = arith.constant 0 : index
    %0 = vector.load %arg1[%c0, %c0_0] : memref<16x128xf32, #tpu.memory_space<vmem>>, vector<16x128xf32>
    %c0_1 = arith.constant 0 : index
    %c0_2 = arith.constant 0 : index
    %1 = vector.load %arg2[%c0_1, %c0_2] : memref<128x128xf32, #tpu.memory_space<vmem>>, vector<128x128xf32>
    %cst = arith.constant dense<0.000000e+00> : vector<16x128xf32>
    %2 = tpu.matmul %0, %1, %cst {dimension_numbers = #tpu.dot_dimension_numbers<[1], [0], [0], [1], [0, 0, 1, 1], [], []>} : vector<16x128xf32>, vector<128x128xf32>, vector<16x128xf32> -> vector<16x128xf32>
    %c0_3 = arith.constant 0 : index
    %c0_4 = arith.constant 0 : index
    %3 = vector.load %arg4[%c0_3, %c0_4] : memref<1x128xf32, #tpu.memory_space<vmem>>, vector<1x128xf32>
    %4 = vector.broadcast %3 : vector<1x128xf32> to vector<16x128xf32>
    %5 = arith.addf %2, %4 : vector<16x128xf32>
    %6 = math.tanh %5 : vector<16x128xf32>
    %c0_5 = arith.constant 0 : index
    %c0_6 = arith.constant 0 : index
    %7 = vector.load %arg3[%c0_5, %c0_6] : memref<128x128xf32, #tpu.memory_space<vmem>>, vector<128x128xf32>
    %cst_7 = arith.constant dense<0.000000e+00> : vector<16x128xf32>
    %8 = tpu.matmul %6, %7, %cst_7 {dimension_numbers = #tpu.dot_dimension_numbers<[1], [0], [0], [1], [0, 0, 1, 1], [], []>} : vector<16x128xf32>, vector<128x128xf32>, vector<16x128xf32> -> vector<16x128xf32>
    %c0_8 = arith.constant 0 : index
    %c0_9 = arith.constant 0 : index
    %9 = vector.load %arg5[%c0_8, %c0_9] : memref<1x128xf32, #tpu.memory_space<vmem>>, vector<1x128xf32>
    %10 = vector.broadcast %9 : vector<1x128xf32> to vector<16x128xf32>
    %11 = arith.addf %8, %10 : vector<16x128xf32>
    %12 = math.tanh %11 : vector<16x128xf32>
    %c0_10 = arith.constant 0 : index
    %c0_11 = arith.constant 0 : index
    %13 = vector.load %arg6[%c0_10, %c0_11] : memref<16x128xf32, #tpu.memory_space<vmem>>, vector<16x128xf32>
    tpu.vector_store %arg6[%c0_10, %c0_11], %12 {strides = array<i32>} : memref<16x128xf32, #tpu.memory_space<vmem>>, vector<16x128xf32>,
    return
  }
  func.func @transform_0(%arg0: i32) -> (i32, i32) {
    %c0_i32 = arith.constant 0 : i32
    %c0_i32_0 = arith.constant 0 : i32
    return %arg0, %c0_i32 : i32, i32
  }
  func.func @transform_1(%arg0: i32) -> (i32, i32) {
    %c0_i32 = arith.constant 0 : i32
    %c0_i32_0 = arith.constant 0 : i32
    %c0_i32_1 = arith.constant 0 : i32
    return %c0_i32, %c0_i32_0 : i32, i32
  }
  func.func @transform_2(%arg0: i32) -> (i32, i32) {
    %c0_i32 = arith.constant 0 : i32
    %c0_i32_0 = arith.constant 0 : i32
    %c0_i32_1 = arith.constant 0 : i32
    return %c0_i32, %c0_i32_0 : i32, i32
  }
  func.func @transform_3(%arg0: i32) -> (i32, i32) {
    %c0_i32 = arith.constant 0 : i32
    %c0_i32_0 = arith.constant 0 : i32
    %c0_i32_1 = arith.constant 0 : i32
    return %c0_i32, %c0_i32_0 : i32, i32
  }
  func.func @transform_4(%arg0: i32) -> (i32, i32) {
    %c0_i32 = arith.constant 0 : i32
    %c0_i32_0 = arith.constant 0 : i32
    %c0_i32_1 = arith.constant 0 : i32
    return %c0_i32, %c0_i32_0 : i32, i32
  }
  func.func @transform_5(%arg0: i32) -> (i32, i32) {
    %c0_i32 = arith.constant 0 : i32
    %c0_i32_0 = arith.constant 0 : i32
    return %arg0, %c0_i32 : i32, i32
  }
}

module attributes {stable_mosaic.version = 11 : i64} {
  func.func @kernel(%arg0: i32, %arg1: memref<16x128xf32, #tpu.memory_space<vmem>>, %arg2: memref<128x128xf32, #tpu.memory_space<vmem>>, %arg3: memref<128x128xf32, #tpu.memory_space<vmem>>, %arg4: memref<1x128xf32, #tpu.memory_space<vmem>>, %arg5: memref<1x128xf32, #tpu.memory_space<vmem>>, %arg6: memref<16x128xf32, #tpu.memory_space<vmem>>) attributes {dimension_semantics = [#tpu.dimension_semantics<parallel>], iteration_bounds = array<i64: 1>, scalar_prefetch = 0 : i64, scratch_operands = 0 : i64, tpu.core_type = #tpu.core_type<tc>, window_params = [{transform_indices = @transform_0, window_bounds = array<i64: 16, 128>}, {pipeline_mode = #tpu.pipeline_mode<synchronous>, transform_indices = @transform_1, window_bounds = array<i64: 128, 128>}, {pipeline_mode = #tpu.pipeline_mode<synchronous>, transform_indices = @transform_2, window_bounds = array<i64: 128, 128>}, {pipeline_mode = #tpu.pipeline_mode<synchronous>, transform_indices = @transform_3, window_bounds = array<i64: 1, 128>}, {pipeline_mode = #tpu.pipeline_mode<synchronous>, transform_indices = @transform_4, window_bounds = array<i64: 1, 128>}, {transform_indices = @transform_5, window_bounds = array<i64: 16, 128>}]} {
    %c0 = arith.constant 0 : index
    %c0_0 = arith.constant 0 : index
    %0 = vector.load %arg1[%c0, %c0_0] : memref<16x128xf32, #tpu.memory_space<vmem>>, vector<16x128xf32>
    %c0_1 = arith.constant 0 : index
    %c0_2 = arith.constant 0 : index
    %1 = vector.load %arg2[%c0_1, %c0_2] : memref<128x128xf32, #tpu.memory_space<vmem>>, vector<128x128xf32>
    %cst = arith.constant dense<0.000000e+00> : vector<16x128xf32>
    %2 = tpu.matmul %0, %1, %cst {dimension_numbers = #tpu.dot_dimension_numbers<[1], [0], [0], [1], [0, 0, 1, 1], [], []>} : vector<16x128xf32>, vector<128x128xf32>, vector<16x128xf32> -> vector<16x128xf32>
    %c0_3 = arith.constant 0 : index
    %c0_4 = arith.constant 0 : index
    %3 = vector.load %arg4[%c0_3, %c0_4] : memref<1x128xf32, #tpu.memory_space<vmem>>, vector<1x128xf32>
    %4 = vector.broadcast %3 : vector<1x128xf32> to vector<16x128xf32>
    %5 = arith.addf %2, %4 : vector<16x128xf32>
    %6 = math.tanh %5 : vector<16x128xf32>
    %c0_5 = arith.constant 0 : index
    %c0_6 = arith.constant 0 : index
    %7 = vector.load %arg3[%c0_5, %c0_6] : memref<128x128xf32, #tpu.memory_space<vmem>>, vector<128x128xf32>
    %cst_7 = arith.constant dense<0.000000e+00> : vector<16x128xf32>
    %8 = tpu.matmul %6, %7, %cst_7 {dimension_numbers = #tpu.dot_dimension_numbers<[1], [0], [0], [1], [0, 0, 1, 1], [], []>} : vector<16x128xf32>, vector<128x128xf32>, vector<16x128xf32> -> vector<16x128xf32>
    %c0_8 = arith.constant 0 : index
    %c0_9 = arith.constant 0 : index
    %9 = vector.load %arg5[%c0_8, %c0_9] : memref<1x128xf32, #tpu.memory_space<vmem>>, vector<1x128xf32>
    %10 = vector.broadcast %9 : vector<1x128xf32> to vector<16x128xf32>
    %11 = arith.addf %8, %10 : vector<16x128xf32>
    %12 = math.tanh %11 : vector<16x128xf32>
    %c0_10 = arith.constant 0 : index
    %c0_11 = arith.constant 0 : index
    %13 = vector.load %arg6[%c0_10, %c0_11] : memref<16x128xf32, #tpu.memory_space<vmem>>, vector<16x128xf32>
    tpu.vector_store %arg6[%c0_10, %c0_11], %12 {strides = array<i32>} : memref<16x128xf32, #tpu.memory_space<vmem>>, vector<16x128xf32>,
    return
  }
  func.func @transform_0(%arg0: i32) -> (i32, i32) {
    %c0_i32 = arith.constant 0 : i32
    %c0_i32_0 = arith.constant 0 : i32
    return %arg0, %c0_i32 : i32, i32
  }
  func.func @transform_1(%arg0: i32) -> (i32, i32) {
    %c0_i32 = arith.constant 0 : i32
    %c0_i32_0 = arith.constant 0 : i32
    %c0_i32_1 = arith.constant 0 : i32
    return %c0_i32, %c0_i32_0 : i32, i32
  }
  func.func @transform_2(%arg0: i32) -> (i32, i32) {
    %c0_i32 = arith.constant 0 : i32
    %c0_i32_0 = arith.constant 0 : i32
    %c0_i32_1 = arith.constant 0 : i32
    return %c0_i32, %c0_i32_0 : i32, i32
  }
  func.func @transform_3(%arg0: i32) -> (i32, i32) {
    %c0_i32 = arith.constant 0 : i32
    %c0_i32_0 = arith.constant 0 : i32
    %c0_i32_1 = arith.constant 0 : i32
    return %c0_i32, %c0_i32_0 : i32, i32
  }
  func.func @transform_4(%arg0: i32) -> (i32, i32) {
    %c0_i32 = arith.constant 0 : i32
    %c0_i32_0 = arith.constant 0 : i32
    %c0_i32_1 = arith.constant 0 : i32
    return %c0_i32, %c0_i32_0 : i32, i32
  }
  func.func @transform_5(%arg0: i32) -> (i32, i32) {
    %c0_i32 = arith.constant 0 : i32
    %c0_i32_0 = arith.constant 0 : i32
    return %arg0, %c0_i32 : i32, i32
  }
}

</mosaic_0001>

<llo_original>
// kernel: feedforward_apply.1
$region0: #{feedforward_apply.1}
  #allocation0 [shape = 'u32[]', space=smem, size = 0x4, offset = 0x4, fixed_abs, tag = 'smem constant byte address 0x4 - core index']
  #allocation1 [shape = 'u32[72,128]{1,0:T(1,128)}', space=vmem, size = 0x9000, scoped, tag = 'internal scratch']
  %s0 = inlined_call_operand.vmem [shape: f32[16,128], index: 0, kind: input, shape index: {}]
  %s1 = inlined_call_operand.hbm [shape: f32[128,128], index: 1, kind: input, shape index: {}]
  %s2 = inlined_call_operand.hbm [shape: f32[128,128], index: 2, kind: input, shape index: {}]
  %s3 = inlined_call_operand.vmem [shape: f32[1,128], index: 3, kind: input, shape index: {}]
  %s4 = inlined_call_operand.vmem [shape: f32[1,128], index: 4, kind: input, shape index: {}]
  %s5 = inlined_call_operand.hbm [shape: f32[16,128], index: 5, kind: output, shape index: {}]
  %s6 = sld [smem:[#allocation0]]
  $region38: #{feedforward_apply.1} parent=0
    _
  %s8 = ssub.s32 1, %s6
  %s9 = scalar_select 0, %s8, %s6
  $region1: #{feedforward_apply.1} parent=0
    #allocation2 [shape = 'u8[65536]{0}', space=vmem, size = 0x10000, scoped, tag = 'input window, operand 1, single buffered']
    #allocation3 [shape = 's32[1]{0}', space=sflag, size = 0x4, scoped, tag = 'scoped memory for feedforward_apply.1']
    #allocation4 [shape = 's32[1]{0}', space=sflag, size = 0x4, scoped, tag = 'scoped memory for feedforward_apply.1']
    #allocation5 [shape = 'u8[65536]{0}', space=vmem, size = 0x10000, scoped, tag = 'input window, operand 2, single buffered']
    #allocation6 [shape = 's32[1]{0}', space=sflag, size = 0x4, scoped, tag = 'scoped memory for feedforward_apply.1']
    #allocation7 [shape = 'u8[8192]{0}', space=vmem, size = 0x2000, scoped, tag = 'output window, operand 0, single buffered']
    %10 = vsyncpa [#allocation3], 0
    %11 = vsyncpa [#allocation6], 0
    %12 = vsyncpa [#allocation4], 0
    // Predicated region
    $region2: #{feedforward_apply.1} parent=1 // pred_check
      _
    $region3: #{feedforward_apply.1} parent=1 // pred_check_branch
      %14 = sbr.rel (0) target = $region5
    $region4: #{feedforward_apply.1} parent=1 // pred_region
      _
    $region5: #{feedforward_apply.1} parent=1 // pred_fallthru
      _
    // Predicated region
    $region6: #{feedforward_apply.1} parent=1 // pred_check
      _
    $region7: #{feedforward_apply.1} parent=1 // pred_check_branch
      %16 = sbr.rel (0) target = $region9
    $region8: #{feedforward_apply.1} parent=1 // pred_region
      %18 = vsyncadd [#allocation3], 0
      %s19 = sshll.u32 %s1, 4
      %s20 = int_to_ptr.hbm [resolvable:$true] %s19
      %s21 = sshll.u32 [#allocation2], 4
      %s22 = int_to_ptr.vmem [resolvable:$true] %s21
      %27 = dma.hbm_to_vmem [thread:$0]  %s20, 2048, %s22, [#allocation3], 128, 128, 8
    $region9: #{feedforward_apply.1} parent=1 // pred_fallthru
      _
    // Predicated region
    $region10: #{feedforward_apply.1} parent=1 // pred_check
      _
    $region11: #{feedforward_apply.1} parent=1 // pred_check_branch
      %29 = sbr.rel (0) target = $region13
    $region12: #{feedforward_apply.1} parent=1 // pred_region
      %31 = vsyncadd [#allocation6], 0
      %s32 = sshll.u32 %s2, 4
      %s33 = int_to_ptr.hbm [resolvable:$true] %s32
      %s34 = sshll.u32 [#allocation5], 4
      %s35 = int_to_ptr.vmem [resolvable:$true] %s34
      %40 = dma.hbm_to_vmem [thread:$0]  %s33, 2048, %s35, [#allocation6], 128, 128, 8
    $region13: #{feedforward_apply.1} parent=1 // pred_fallthru
      _
    // Predicated region
    $region14: #{feedforward_apply.1} parent=1 // pred_check
      _
    $region15: #{feedforward_apply.1} parent=1 // pred_check_branch
      %42 = sbr.rel (0) target = $region17
    $region16: #{feedforward_apply.1} parent=1 // pred_region
      _
    $region17: #{feedforward_apply.1} parent=1 // pred_fallthru
      _
    // Predicated region
    $region18: #{feedforward_apply.1} parent=1 // pred_check
      _
    $region19: #{feedforward_apply.1} parent=1 // pred_check_branch
      %44 = sbr.rel (0) target = $region21
    $region20: #{feedforward_apply.1} parent=1 // pred_region
      _
    $region21: #{feedforward_apply.1} parent=1 // pred_fallthru
      _
    // Predicated region
    $region22: #{feedforward_apply.1} parent=1 // pred_check
      _
    $region23: #{feedforward_apply.1} parent=1 // pred_check_branch
      %46 = sbr.rel (0) target = $region25
    $region24: #{feedforward_apply.1} parent=1 // pred_region
      %48 = dma.done [#allocation3], 2048
    $region25: #{feedforward_apply.1} parent=1 // pred_fallthru
      _
    // Predicated region
    $region26: #{feedforward_apply.1} parent=1 // pred_check
      _
    $region27: #{feedforward_apply.1} parent=1 // pred_check_branch
      %50 = sbr.rel (0) target = $region29
    $region28: #{feedforward_apply.1} parent=1 // pred_region
      %52 = dma.done [#allocation6], 2048
    $region29: #{feedforward_apply.1} parent=1 // pred_fallthru
      _
    %v53 = vld [vmem:[%s0] sm:$0xff]
    %v54 = vld [vmem:[%s0 + $0x8] sm:$0xff]
    %v55 = vld [vmem:[#allocation2] sm:$0xff]
    %v56 = vld [vmem:[#allocation2 + $0x8] sm:$0xff]
    %v57 = vld [vmem:[#allocation2 + $0x10] sm:$0xff]
    %v58 = vld [vmem:[#allocation2 + $0x18] sm:$0xff]
    %v59 = vld [vmem:[#allocation2 + $0x20] sm:$0xff]
    %v60 = vld [vmem:[#allocation2 + $0x28] sm:$0xff]
    %v61 = vld [vmem:[#allocation2 + $0x30] sm:$0xff]
    %v62 = vld [vmem:[#allocation2 + $0x38] sm:$0xff]
    %v63 = vld [vmem:[#allocation2 + $0x40] sm:$0xff]
    %v64 = vld [vmem:[#allocation2 + $0x48] sm:$0xff]
    %v65 = vld [vmem:[#allocation2 + $0x50] sm:$0xff]
    %v66 = vld [vmem:[#allocation2 + $0x58] sm:$0xff]
    %v67 = vld [vmem:[#allocation2 + $0x60] sm:$0xff]
    %v68 = vld [vmem:[#allocation2 + $0x68] sm:$0xff]
    %v69 = vld [vmem:[#allocation2 + $0x70] sm:$0xff]
    %v70 = vld [vmem:[#allocation2 + $0x78] sm:$0xff]
    %v71 = vld [vmem:[%s3] sm:$0x1]
    %v73 = vperm.slane %v71, 0
    %75 = vmatpush.msra.mxu0 %v70
    %76 = vmatpush.msra.mxu0 %v69
    %77 = vmatpush.msra.mxu0 %v68
    %78 = vmatpush.msra.mxu0 %v67
    %79 = vmatpush.msra.mxu0 %v66
    %80 = vmatpush.msra.mxu0 %v65
    %81 = vmatpush.msra.mxu0 %v64
    %82 = vmatpush.msra.mxu0 %v63
    %83 = vmatpush.msra.mxu0 %v62
    %84 = vmatpush.msra.mxu0 %v61
    %85 = vmatpush.msra.mxu0 %v60
    %86 = vmatpush.msra.mxu0 %v59
    %87 = vmatpush.msra.mxu0 %v58
    %88 = vmatpush.msra.mxu0 %v57
    %89 = vmatpush.msra.mxu0 %v56
    %90 = vmatpush.msra.mxu0 %v55
    %91 = vmatmul.f32.gmra.mxu0 %v53
    %v92 = vpop.f32.mrf.mxu0
    %v93 = vadd.f32 %v73, %v92
    %94 = vmatmul.f32.gmra.mxu0 %v54
    %v95 = vpop.f32.mrf.mxu0
    %v96 = vadd.f32 %v73, %v95
    %97 = vdwg.mxu0
    %v98 = vtanh.pop %v93
    %v99 = vtanh.pop %v96
    %v100 = vld [vmem:[#allocation5] sm:$0xff]
    %v101 = vld [vmem:[#allocation5 + $0x8] sm:$0xff]
    %v102 = vld [vmem:[#allocation5 + $0x10] sm:$0xff]
    %v103 = vld [vmem:[#allocation5 + $0x18] sm:$0xff]
    %v104 = vld [vmem:[#allocation5 + $0x20] sm:$0xff]
    %v105 = vld [vmem:[#allocation5 + $0x28] sm:$0xff]
    %v106 = vld [vmem:[#allocation5 + $0x30] sm:$0xff]
    %v107 = vld [vmem:[#allocation5 + $0x38] sm:$0xff]
    %v108 = vld [vmem:[#allocation5 + $0x40] sm:$0xff]
    %v109 = vld [vmem:[#allocation5 + $0x48] sm:$0xff]
    %v110 = vld [vmem:[#allocation5 + $0x50] sm:$0xff]
    %v111 = vld [vmem:[#allocation5 + $0x58] sm:$0xff]
    %v112 = vld [vmem:[#allocation5 + $0x60] sm:$0xff]
    %v113 = vld [vmem:[#allocation5 + $0x68] sm:$0xff]
    %v114 = vld [vmem:[#allocation5 + $0x70] sm:$0xff]
    %v115 = vld [vmem:[#allocation5 + $0x78] sm:$0xff]
    %v116 = vld [vmem:[%s4] sm:$0x1]
    %v118 = vperm.slane %v116, 0
    %120 = vmatpush.msra.mxu0 %v115
    %121 = vmatpush.msra.mxu0 %v114
    %122 = vmatpush.msra.mxu0 %v113
    %123 = vmatpush.msra.mxu0 %v112
    %124 = vmatpush.msra.mxu0 %v111
    %125 = vmatpush.msra.mxu0 %v110
    %126 = vmatpush.msra.mxu0 %v109
    %127 = vmatpush.msra.mxu0 %v108
    %128 = vmatpush.msra.mxu0 %v107
    %129 = vmatpush.msra.mxu0 %v106
    %130 = vmatpush.msra.mxu0 %v105
    %131 = vmatpush.msra.mxu0 %v104
    %132 = vmatpush.msra.mxu0 %v103
    %133 = vmatpush.msra.mxu0 %v102
    %134 = vmatpush.msra.mxu0 %v101
    %135 = vmatpush.msra.mxu0 %v100
    %136 = vmatmul.f32.gmra.mxu0 %v98
    %v137 = vpop.f32.mrf.mxu0
    %v138 = vadd.f32 %v118, %v137
    %139 = vmatmul.f32.gmra.mxu0 %v99
    %v140 = vpop.f32.mrf.mxu0
    %v141 = vadd.f32 %v118, %v140
    %142 = vdwg.mxu0
    %v143 = vtanh.pop %v138
    %v144 = vtanh.pop %v141
    %145 = vst [vmem:[#allocation7] sm:$0xff] %v143
    %146 = vst [vmem:[#allocation7 + $0x8] sm:$0xff] %v144
    // Predicated region
    $region30: #{feedforward_apply.1} parent=1 // pred_check
      _
    $region31: #{feedforward_apply.1} parent=1 // pred_check_branch
      %148 = sbr.rel (0) target = $region33
    $region32: #{feedforward_apply.1} parent=1 // pred_region
      %150 = vsyncadd [#allocation4], 0
      %s151 = sshll.u32 [#allocation7], 4
      %s152 = int_to_ptr.vmem [resolvable:$true] %s151
      %s153 = sshll.u32 %s5, 4
      %s154 = int_to_ptr.hbm [resolvable:$true] %s153
      %159 = dma.vmem_to_hbm [thread:$0]  %s152, 256, %s154, [#allocation4], 128, 128, 8
    $region33: #{feedforward_apply.1} parent=1 // pred_fallthru
      _
    // Predicated region
    $region34: #{feedforward_apply.1} parent=1 // pred_check
      _
    $region35: #{feedforward_apply.1} parent=1 // pred_check_branch
      %161 = sbr.rel (0) target = $region37
    $region36: #{feedforward_apply.1} parent=1 // pred_region
      %163 = dma.done [#allocation4], 256
    $region37: #{feedforward_apply.1} parent=1 // pred_fallthru
      _
    %164 = vsyncpa [#allocation3], 1
    %165 = vsyncpa [#allocation6], 1
    %166 = vsyncpa [#allocation4], 1

// kernel: feedforward_apply.1
$region0: #{feedforward_apply.1}
  #allocation0 [shape = 'u32[]', space=smem, size = 0x4, offset = 0x4, fixed_abs, tag = 'smem constant byte address 0x4 - core index']
  #allocation1 [shape = 'u32[72,128]{1,0:T(1,128)}', space=vmem, size = 0x9000, scoped, tag = 'internal scratch']
  %s0 = inlined_call_operand.vmem [shape: f32[16,128], index: 0, kind: input, shape index: {}]
  %s1 = inlined_call_operand.hbm [shape: f32[128,128], index: 1, kind: input, shape index: {}]
  %s2 = inlined_call_operand.hbm [shape: f32[128,128], index: 2, kind: input, shape index: {}]
  %s3 = inlined_call_operand.vmem [shape: f32[1,128], index: 3, kind: input, shape index: {}]
  %s4 = inlined_call_operand.vmem [shape: f32[1,128], index: 4, kind: input, shape index: {}]
  %s5 = inlined_call_operand.hbm [shape: f32[16,128], index: 5, kind: output, shape index: {}]
  %s6 = sld [smem:[#allocation0]]
  $region38: #{feedforward_apply.1} parent=0
    _
  %s8 = ssub.s32 1, %s6
  %s9 = scalar_select 0, %s8, %s6
  $region1: #{feedforward_apply.1} parent=0
    #allocation2 [shape = 'u8[65536]{0}', space=vmem, size = 0x10000, scoped, tag = 'input window, operand 1, single buffered']
    #allocation3 [shape = 's32[1]{0}', space=sflag, size = 0x4, scoped, tag = 'scoped memory for feedforward_apply.1']
    #allocation4 [shape = 's32[1]{0}', space=sflag, size = 0x4, scoped, tag = 'scoped memory for feedforward_apply.1']
    #allocation5 [shape = 'u8[65536]{0}', space=vmem, size = 0x10000, scoped, tag = 'input window, operand 2, single buffered']
    #allocation6 [shape = 's32[1]{0}', space=sflag, size = 0x4, scoped, tag = 'scoped memory for feedforward_apply.1']
    #allocation7 [shape = 'u8[8192]{0}', space=vmem, size = 0x2000, scoped, tag = 'output window, operand 0, single buffered']
    %10 = vsyncpa [#allocation3], 0
    %11 = vsyncpa [#allocation6], 0
    %12 = vsyncpa [#allocation4], 0
    // Predicated region
    $region2: #{feedforward_apply.1} parent=1 // pred_check
      _
    $region3: #{feedforward_apply.1} parent=1 // pred_check_branch
      %14 = sbr.rel (0) target = $region5
    $region4: #{feedforward_apply.1} parent=1 // pred_region
      _
    $region5: #{feedforward_apply.1} parent=1 // pred_fallthru
      _
    // Predicated region
    $region6: #{feedforward_apply.1} parent=1 // pred_check
      _
    $region7: #{feedforward_apply.1} parent=1 // pred_check_branch
      %16 = sbr.rel (0) target = $region9
    $region8: #{feedforward_apply.1} parent=1 // pred_region
      %18 = vsyncadd [#allocation3], 0
      %s19 = sshll.u32 %s1, 4
      %s20 = int_to_ptr.hbm [resolvable:$true] %s19
      %s21 = sshll.u32 [#allocation2], 4
      %s22 = int_to_ptr.vmem [resolvable:$true] %s21
      %27 = dma.hbm_to_vmem [thread:$0]  %s20, 2048, %s22, [#allocation3], 128, 128, 8
    $region9: #{feedforward_apply.1} parent=1 // pred_fallthru
      _
    // Predicated region
    $region10: #{feedforward_apply.1} parent=1 // pred_check
      _
    $region11: #{feedforward_apply.1} parent=1 // pred_check_branch
      %29 = sbr.rel (0) target = $region13
    $region12: #{feedforward_apply.1} parent=1 // pred_region
      %31 = vsyncadd [#allocation6], 0
      %s32 = sshll.u32 %s2, 4
      %s33 = int_to_ptr.hbm [resolvable:$true] %s32
      %s34 = sshll.u32 [#allocation5], 4
      %s35 = int_to_ptr.vmem [resolvable:$true] %s34
      %40 = dma.hbm_to_vmem [thread:$0]  %s33, 2048, %s35, [#allocation6], 128, 128, 8
    $region13: #{feedforward_apply.1} parent=1 // pred_fallthru
      _
    // Predicated region
    $region14: #{feedforward_apply.1} parent=1 // pred_check
      _
    $region15: #{feedforward_apply.1} parent=1 // pred_check_branch
      %42 = sbr.rel (0) target = $region17
    $region16: #{feedforward_apply.1} parent=1 // pred_region
      _
    $region17: #{feedforward_apply.1} parent=1 // pred_fallthru
      _
    // Predicated region
    $region18: #{feedforward_apply.1} parent=1 // pred_check
      _
    $region19: #{feedforward_apply.1} parent=1 // pred_check_branch
      %44 = sbr.rel (0) target = $region21
    $region20: #{feedforward_apply.1} parent=1 // pred_region
      _
    $region21: #{feedforward_apply.1} parent=1 // pred_fallthru
      _
    // Predicated region
    $region22: #{feedforward_apply.1} parent=1 // pred_check
      _
    $region23: #{feedforward_apply.1} parent=1 // pred_check_branch
      %46 = sbr.rel (0) target = $region25
    $region24: #{feedforward_apply.1} parent=1 // pred_region
      %48 = dma.done [#allocation3], 2048
    $region25: #{feedforward_apply.1} parent=1 // pred_fallthru
      _
    // Predicated region
    $region26: #{feedforward_apply.1} parent=1 // pred_check
      _
    $region27: #{feedforward_apply.1} parent=1 // pred_check_branch
      %50 = sbr.rel (0) target = $region29
    $region28: #{feedforward_apply.1} parent=1 // pred_region
      %52 = dma.done [#allocation6], 2048
    $region29: #{feedforward_apply.1} parent=1 // pred_fallthru
      _
    %v53 = vld [vmem:[%s0] sm:$0xff]
    %v54 = vld [vmem:[%s0 + $0x8] sm:$0xff]
    %v55 = vld [vmem:[#allocation2] sm:$0xff]
    %v56 = vld [vmem:[#allocation2 + $0x8] sm:$0xff]
    %v57 = vld [vmem:[#allocation2 + $0x10] sm:$0xff]
    %v58 = vld [vmem:[#allocation2 + $0x18] sm:$0xff]
    %v59 = vld [vmem:[#allocation2 + $0x20] sm:$0xff]
    %v60 = vld [vmem:[#allocation2 + $0x28] sm:$0xff]
    %v61 = vld [vmem:[#allocation2 + $0x30] sm:$0xff]
    %v62 = vld [vmem:[#allocation2 + $0x38] sm:$0xff]
    %v63 = vld [vmem:[#allocation2 + $0x40] sm:$0xff]
    %v64 = vld [vmem:[#allocation2 + $0x48] sm:$0xff]
    %v65 = vld [vmem:[#allocation2 + $0x50] sm:$0xff]
    %v66 = vld [vmem:[#allocation2 + $0x58] sm:$0xff]
    %v67 = vld [vmem:[#allocation2 + $0x60] sm:$0xff]
    %v68 = vld [vmem:[#allocation2 + $0x68] sm:$0xff]
    %v69 = vld [vmem:[#allocation2 + $0x70] sm:$0xff]
    %v70 = vld [vmem:[#allocation2 + $0x78] sm:$0xff]
    %v71 = vld [vmem:[%s3] sm:$0x1]
    %v73 = vperm.slane %v71, 0
    %75 = vmatpush.msra.mxu0 %v70
    %76 = vmatpush.msra.mxu0 %v69
    %77 = vmatpush.msra.mxu0 %v68
    %78 = vmatpush.msra.mxu0 %v67
    %79 = vmatpush.msra.mxu0 %v66
    %80 = vmatpush.msra.mxu0 %v65
    %81 = vmatpush.msra.mxu0 %v64
    %82 = vmatpush.msra.mxu0 %v63
    %83 = vmatpush.msra.mxu0 %v62
    %84 = vmatpush.msra.mxu0 %v61
    %85 = vmatpush.msra.mxu0 %v60
    %86 = vmatpush.msra.mxu0 %v59
    %87 = vmatpush.msra.mxu0 %v58
    %88 = vmatpush.msra.mxu0 %v57
    %89 = vmatpush.msra.mxu0 %v56
    %90 = vmatpush.msra.mxu0 %v55
    %91 = vmatmul.f32.gmra.mxu0 %v53
    %v92 = vpop.f32.mrf.mxu0
    %v93 = vadd.f32 %v73, %v92
    %94 = vmatmul.f32.gmra.mxu0 %v54
    %v95 = vpop.f32.mrf.mxu0
    %v96 = vadd.f32 %v73, %v95
    %97 = vdwg.mxu0
    %v98 = vtanh.pop %v93
    %v99 = vtanh.pop %v96
    %v100 = vld [vmem:[#allocation5] sm:$0xff]
    %v101 = vld [vmem:[#allocation5 + $0x8] sm:$0xff]
    %v102 = vld [vmem:[#allocation5 + $0x10] sm:$0xff]
    %v103 = vld [vmem:[#allocation5 + $0x18] sm:$0xff]
    %v104 = vld [vmem:[#allocation5 + $0x20] sm:$0xff]
    %v105 = vld [vmem:[#allocation5 + $0x28] sm:$0xff]
    %v106 = vld [vmem:[#allocation5 + $0x30] sm:$0xff]
    %v107 = vld [vmem:[#allocation5 + $0x38] sm:$0xff]
    %v108 = vld [vmem:[#allocation5 + $0x40] sm:$0xff]
    %v109 = vld [vmem:[#allocation5 + $0x48] sm:$0xff]
    %v110 = vld [vmem:[#allocation5 + $0x50] sm:$0xff]
    %v111 = vld [vmem:[#allocation5 + $0x58] sm:$0xff]
    %v112 = vld [vmem:[#allocation5 + $0x60] sm:$0xff]
    %v113 = vld [vmem:[#allocation5 + $0x68] sm:$0xff]
    %v114 = vld [vmem:[#allocation5 + $0x70] sm:$0xff]
    %v115 = vld [vmem:[#allocation5 + $0x78] sm:$0xff]
    %v116 = vld [vmem:[%s4] sm:$0x1]
    %v118 = vperm.slane %v116, 0
    %120 = vmatpush.msra.mxu0 %v115
    %121 = vmatpush.msra.mxu0 %v114
    %122 = vmatpush.msra.mxu0 %v113
    %123 = vmatpush.msra.mxu0 %v112
    %124 = vmatpush.msra.mxu0 %v111
    %125 = vmatpush.msra.mxu0 %v110
    %126 = vmatpush.msra.mxu0 %v109
    %127 = vmatpush.msra.mxu0 %v108
    %128 = vmatpush.msra.mxu0 %v107
    %129 = vmatpush.msra.mxu0 %v106
    %130 = vmatpush.msra.mxu0 %v105
    %131 = vmatpush.msra.mxu0 %v104
    %132 = vmatpush.msra.mxu0 %v103
    %133 = vmatpush.msra.mxu0 %v102
    %134 = vmatpush.msra.mxu0 %v101
    %135 = vmatpush.msra.mxu0 %v100
    %136 = vmatmul.f32.gmra.mxu0 %v98
    %v137 = vpop.f32.mrf.mxu0
    %v138 = vadd.f32 %v118, %v137
    %139 = vmatmul.f32.gmra.mxu0 %v99
    %v140 = vpop.f32.mrf.mxu0
    %v141 = vadd.f32 %v118, %v140
    %142 = vdwg.mxu0
    %v143 = vtanh.pop %v138
    %v144 = vtanh.pop %v141
    %145 = vst [vmem:[#allocation7] sm:$0xff] %v143
    %146 = vst [vmem:[#allocation7 + $0x8] sm:$0xff] %v144
    // Predicated region
    $region30: #{feedforward_apply.1} parent=1 // pred_check
      _
    $region31: #{feedforward_apply.1} parent=1 // pred_check_branch
      %148 = sbr.rel (0) target = $region33
    $region32: #{feedforward_apply.1} parent=1 // pred_region
      %150 = vsyncadd [#allocation4], 0
      %s151 = sshll.u32 [#allocation7], 4
      %s152 = int_to_ptr.vmem [resolvable:$true] %s151
      %s153 = sshll.u32 %s5, 4
      %s154 = int_to_ptr.hbm [resolvable:$true] %s153
      %159 = dma.vmem_to_hbm [thread:$0]  %s152, 256, %s154, [#allocation4], 128, 128, 8
    $region33: #{feedforward_apply.1} parent=1 // pred_fallthru
      _
    // Predicated region
    $region34: #{feedforward_apply.1} parent=1 // pred_check
      _
    $region35: #{feedforward_apply.1} parent=1 // pred_check_branch
      %161 = sbr.rel (0) target = $region37
    $region36: #{feedforward_apply.1} parent=1 // pred_region
      %163 = dma.done [#allocation4], 256
    $region37: #{feedforward_apply.1} parent=1 // pred_fallthru
      _
    %164 = vsyncpa [#allocation3], 1
    %165 = vsyncpa [#allocation6], 1
    %166 = vsyncpa [#allocation4], 1

</llo_original>
